<compile_context>
chip_gen: v7x
topology: tpu7x:2x2x1
jax: 0.10.0
libtpu: 0.0.40
codegen_flags: <defaults>
</compile_context>

<pallas_src>
import functools
import math

import jax
import jax.numpy as jnp
from jax.experimental import pallas as pl
from jax.experimental.pallas import tpu as pltpu


def _round_up(x, m):
    return ((x + m - 1) // m) * m


def _pick_tile(b, cap=512):
    """Tile size: whole (8-aligned) batch-half for small B, else the cap."""
    if b <= cap:
        return _round_up(max(b, 8), 8)
    return cap


# ---------------------------------------------------------------------------
# Kernel 1: tiled normalize + temperature fold + positive-logit sum (O(N*D)).
# ---------------------------------------------------------------------------
def _prep_kernel(z1_ref, z2_ref, zs_ref, ps_ref, *, temperature, normalize):
    @pl.when(pl.program_id(0) == 0)
    def _init():
        ps_ref[...] = jnp.zeros_like(ps_ref)

    z1 = z1_ref[...].astype(jnp.float32)
    z2 = z2_ref[...].astype(jnp.float32)
    if normalize:
        # F.normalize(x, dim=1): x / max(||x||_2, 1e-12). Padded (zero) rows
        # stay exactly zero, so they contribute nothing to pos_sum.
        def _norm(x):
            nrm = jnp.sqrt(jnp.sum(x * x, axis=-1, keepdims=True))
            return x / jnp.maximum(nrm, 1e-12)
        z1 = _norm(z1)
        z2 = _norm(z2)

    inv_sqrt_t = jnp.float32(1.0 / float(temperature) ** 0.5)
    a = (z1 * inv_sqrt_t).astype(zs_ref.dtype)   # first-half rows, T folded in
    b = (z2 * inv_sqrt_t).astype(zs_ref.dtype)   # second-half rows, T folded in
    zs_ref[0] = a
    zs_ref[1] = b

    # Sum of positive logits sim[i, partner(i)] over all rows of this block:
    # identical for both halves -> 2 * sum_i <a_i, b_i>. Computed from the
    # *cast* operands so the quantization matches the LSE term (bf16 path).
    prod = a.astype(jnp.float32) * b.astype(jnp.float32)
    ps_ref[...] += 2.0 * jnp.sum(prod, keepdims=True)


# ---------------------------------------------------------------------------
# Kernel 2: flash-style tiled logsumexp over the (2*B_pad x 2*B_pad) scores.
# ---------------------------------------------------------------------------
def _flash_lse_kernel(zr_ref, zc_ref, lse_ref, m_ref, s_ref,
                      *, block_r, block_c, valid_b):
    rh = pl.program_id(0)   # row half    (0 -> z1 rows, 1 -> z2 rows)
    rb = pl.program_id(1)   # row block within the half
    ch = pl.program_id(2)   # column half
    cb = pl.program_id(3)   # column block within the half
    last_ch = pl.num_programs(2) - 1
    last_cb = pl.num_programs(3) - 1

    @pl.when((ch == 0) & (cb == 0))
    def _init():
        m_ref[...] = jnp.full(m_ref.shape, -1e30, jnp.float32)
        s_ref[...] = jnp.zeros(s_ref.shape, jnp.float32)

    zr = zr_ref[0]           # (block_r, D)
    zc = zc_ref[0]           # (block_c, D)
    # Contract on D (NT matmul, no materialized transpose); accumulate in f32.
    scores = jax.lax.dot_general(
        zr, zc, (((1,), (1,)), ((), ())),
        preferred_element_type=jnp.float32)          # (block_r, block_c)

    # Per-tile mask: the true diagonal of the 2B x 2B matrix (same half AND
    # same local index) plus any padded columns. No full N x N mask exists.
    r = jax.lax.broadcasted_iota(jnp.int32, scores.shape, 0) + rb * block_r
    c = jax.lax.broadcasted_iota(jnp.int32, scores.shape, 1) + cb * block_c
    mask = ((r == c) & (rh == ch)) | (c >= valid_b)
    scores = jnp.where(mask, jnp.float32(-1e30), scores)

    # Online (flash) logsumexp update. Masked probabilities are zeroed
    # explicitly so even a fully-masked tile row cannot corrupt the sum.
    m_prev = m_ref[...]
    m_new = jnp.maximum(m_prev, jnp.max(scores, axis=-1, keepdims=True))
    p = jnp.where(mask, jnp.float32(0.0), jnp.exp(scores - m_new))
    s_ref[...] = jnp.exp(m_prev - m_new) * s_ref[...] + \
        jnp.sum(p, axis=-1, keepdims=True)
    m_ref[...] = m_new

    @pl.when((ch == last_ch) & (cb == last_cb))
    def _final():
        lse_ref[0] = m_ref[...] + jnp.log(s_ref[...])


# ---------------------------------------------------------------------------
# Wrapper.
# ---------------------------------------------------------------------------
def simclr_loss(z1, z2, temperature: float = 0.07, normalize: bool = True,
                matmul_dtype=jnp.bfloat16, block_rows=None, block_cols=None):
    B, D = z1.shape
    assert z2.shape == (B, D)

    tr = block_rows or _pick_tile(B)
    tc = block_cols or _pick_tile(B)
    assert tr % 8 == 0 and tc % 8 == 0, "tiles must be multiples of 8"
    b_pad = _round_up(B, math.lcm(tr, tc))
    # Prep-kernel row tile (must divide b_pad).
    tb = 512 if (tr > 512 and tr % 512 == 0) else tr

    if b_pad != B:
        pad = ((0, b_pad - B), (0, 0))
        z1p = jnp.pad(z1, pad)
        z2p = jnp.pad(z2, pad)
    else:
        z1p, z2p = z1, z2

    # ---- Kernel 1: tiled normalize + temperature fold + positive sum. ----
    zs, pos_sum = pl.pallas_call(
        functools.partial(_prep_kernel, temperature=temperature,
                          normalize=normalize),
        out_shape=(jax.ShapeDtypeStruct((2, b_pad, D), matmul_dtype),
                   jax.ShapeDtypeStruct((1, 1), jnp.float32)),
        grid=(b_pad // tb,),
        in_specs=[pl.BlockSpec((tb, D), lambda i: (i, 0)),
                  pl.BlockSpec((tb, D), lambda i: (i, 0))],
        out_specs=(pl.BlockSpec((2, tb, D), lambda i: (0, i, 0)),
                   pl.BlockSpec((1, 1), lambda i: (0, 0))),
        compiler_params=pltpu.CompilerParams(
            dimension_semantics=("arbitrary",)),
    )(z1p, z2p)

    # ---- Kernel 2: flash-style tiled logsumexp (no N^2 materialization). ----
    grid = (2, b_pad // tr, 2, b_pad // tc)
    itemsize = jnp.dtype(matmul_dtype).itemsize
    d_lanes = max(D, 128)
    est = (2 * (tr + tc) * d_lanes * itemsize   # double-buffered operands
           + 6 * tr * tc * 4                    # scores / exp / mask temps
           + 4 * tr * 128 * 4)                  # lse block + m/s scratch (lane-padded)
    vmem_limit = int(min(max(2 * est, 32 * 1024 * 1024), 64 * 1024 * 1024))

    row_lse = pl.pallas_call(
        functools.partial(_flash_lse_kernel, block_r=tr, block_c=tc,
                          valid_b=B),
        out_shape=jax.ShapeDtypeStruct((2, b_pad, 1), jnp.float32),
        grid_spec=pltpu.PrefetchScalarGridSpec(
            num_scalar_prefetch=0,
            grid=grid,
            in_specs=[
                pl.BlockSpec((1, tr, D), lambda rh, rb, ch, cb: (rh, rb, 0)),
                pl.BlockSpec((1, tc, D), lambda rh, rb, ch, cb: (ch, cb, 0)),
            ],
            out_specs=pl.BlockSpec((1, tr, 1),
                                   lambda rh, rb, ch, cb: (rh, rb, 0)),
            scratch_shapes=[pltpu.VMEM((tr, 1), jnp.float32),   # running max
                            pltpu.VMEM((tr, 1), jnp.float32)],  # running sumexp
        ),
        compiler_params=pltpu.CompilerParams(
            dimension_semantics=("parallel", "parallel",
                                 "arbitrary", "arbitrary"),
            vmem_limit_bytes=vmem_limit),
    )(zs, zs)

    # ---- Finalize in plain JAX (former kernel 3): trivial O(N) reduction. ----
    lse_sum = jnp.sum(row_lse[:, :B, 0])
    return (lse_sum - pos_sum[0, 0]) / jnp.float32(2 * B)


def _reference(z1, z2, temperature=0.07, normalize=True):
    # Pure-JAX reference matching the PyTorch forward.
    if normalize:
        z1 = z1 / jnp.maximum(jnp.linalg.norm(z1, axis=1, keepdims=True), 1e-12)
        z2 = z2 / jnp.maximum(jnp.linalg.norm(z2, axis=1, keepdims=True), 1e-12)
    z = jnp.concatenate([z1, z2], axis=0)
    B = z1.shape[0]
    N = 2 * B
    sim = (z @ z.T) / temperature
    i = jnp.arange(N)
    pos = sim[i, (i + B) % N]
    masked = jnp.where(jnp.eye(N, dtype=bool), -jnp.inf, sim)
    lse = jax.scipy.special.logsumexp(masked, axis=-1)
    return jnp.mean(lse - pos)


if __name__ == "__main__":
    key = jax.random.PRNGKey(0)
    k1, k2, k3, k4 = jax.random.split(key, 4)

    # Small aligned case.
    B, D = 8, 32
    z1 = jax.random.normal(k1, (B, D), dtype=jnp.float32)
    z2 = jax.random.normal(k2, (B, D), dtype=jnp.float32)

    # f32 MXU-operand path (exact check against the reference).
    loss_f32 = simclr_loss(z1, z2, temperature=0.07, normalize=True,
                           matmul_dtype=jnp.float32)
    jax.block_until_ready(loss_f32)
    ref = _reference(z1, z2, 0.07, True)
    assert jnp.allclose(loss_f32, ref, rtol=1e-4, atol=1e-4), (loss_f32, ref)

    # normalize=False path.
    loss_nn = simclr_loss(z1, z2, temperature=0.07, normalize=False,
                          matmul_dtype=jnp.float32)
    jax.block_until_ready(loss_nn)
    ref_nn = _reference(z1, z2, 0.07, False)
    assert jnp.allclose(loss_nn, ref_nn, rtol=1e-4, atol=1e-3), (loss_nn, ref_nn)

    # Default bf16 MXU-operand path (production default on v5e/v6e/v7x);
    # temperature=0.07 amplifies logit quantization ~14x, hence loose tol.
    loss_bf16 = simclr_loss(z1, z2, temperature=0.07, normalize=True)
    jax.block_until_ready(loss_bf16)
    assert jnp.isfinite(loss_bf16)
    assert abs(float(loss_bf16) - float(ref)) < 0.2, (loss_bf16, ref)

    # Unaligned batch exercising the pad-and-mask path (B not multiple of 8).
    B2, D2 = 10, 48
    w1 = jax.random.normal(k3, (B2, D2), dtype=jnp.float32)
    w2 = jax.random.normal(k4, (B2, D2), dtype=jnp.float32)
    loss_pad = simclr_loss(w1, w2, temperature=0.1, normalize=True,
                           matmul_dtype=jnp.float32)
    jax.block_until_ready(loss_pad)
    ref_pad = _reference(w1, w2, 0.1, True)
    assert jnp.allclose(loss_pad, ref_pad, rtol=1e-4, atol=1e-4), (loss_pad, ref_pad)

    print("KERNEL_OK")
</pallas_src>

<mosaic_0001>
module attributes {stable_mosaic.version = 11 : i64} {
  func.func @_prep_kernel(%arg0: i32, %arg1: memref<8x32xf32, #tpu.memory_space<vmem>>, %arg2: memref<8x32xf32, #tpu.memory_space<vmem>>, %arg3: memref<2x8x32xf32, #tpu.memory_space<vmem>>, %arg4: memref<1x1xf32, #tpu.memory_space<vmem>>) attributes {dimension_semantics = [#tpu.dimension_semantics<arbitrary>], iteration_bounds = array<i64: 1>, scalar_prefetch = 0 : i64, scratch_operands = 0 : i64, tpu.core_type = #tpu.core_type<tc>, window_params = [{transform_indices = @transform_0, window_bounds = array<i64: 8, 32>}, {transform_indices = @transform_1, window_bounds = array<i64: 8, 32>}, {transform_indices = @transform_2, window_bounds = array<i64: 2, 8, 32>}, {pipeline_mode = #tpu.pipeline_mode<synchronous>, transform_indices = @transform_3, window_bounds = array<i64: 1, 1>}]} {
    %c0_i32 = arith.constant 0 : i32
    %0 = arith.cmpi eq, %arg0, %c0_i32 : i32
    %1 = arith.extui %0 : i1 to i32
    %c0_i32_0 = arith.constant 0 : i32
    %2 = arith.cmpi ne, %1, %c0_i32_0 : i32
    scf.if %2 {
      %cst_20 = arith.constant 0.000000e+00 : f32
      %42 = vector.broadcast %cst_20 : f32 to vector<1x1xf32>
      %c0_21 = arith.constant 0 : index
      %c0_22 = arith.constant 0 : index
      %43 = vector.load %arg4[%c0_21, %c0_22] : memref<1x1xf32, #tpu.memory_space<vmem>>, vector<1x1xf32>
      tpu.vector_store %arg4[%c0_21, %c0_22], %42 {strides = array<i32>} : memref<1x1xf32, #tpu.memory_space<vmem>>, vector<1x1xf32>,
    } else {
    }
    %c0 = arith.constant 0 : index
    %c0_1 = arith.constant 0 : index
    %3 = vector.load %arg1[%c0, %c0_1] : memref<8x32xf32, #tpu.memory_space<vmem>>, vector<8x32xf32>
    %c0_2 = arith.constant 0 : index
    %c0_3 = arith.constant 0 : index
    %4 = vector.load %arg2[%c0_2, %c0_3] : memref<8x32xf32, #tpu.memory_space<vmem>>, vector<8x32xf32>
    %5 = arith.mulf %3, %3 : vector<8x32xf32>
    %cst = arith.constant dense<0.000000e+00> : vector<8xf32>
    %6 = vector.multi_reduction <add>, %5, %cst [1] : vector<8x32xf32> to vector<8xf32>
    %7 = vector.shape_cast %6 : vector<8xf32> to vector<8x1xf32>
    %8 = math.sqrt %7 : vector<8x1xf32>
    %cst_4 = arith.constant 9.99999996E-13 : f32
    %9 = vector.broadcast %cst_4 : f32 to vector<8x1xf32>
    %10 = arith.maximumf %8, %9 : vector<8x1xf32>
    %11 = vector.broadcast %10 : vector<8x1xf32> to vector<8x32xf32>
    %12 = arith.divf %3, %11 : vector<8x32xf32>
    %13 = arith.mulf %4, %4 : vector<8x32xf32>
    %cst_5 = arith.constant dense<0.000000e+00> : vector<8xf32>
    %14 = vector.multi_reduction <add>, %13, %cst_5 [1] : vector<8x32xf32> to vector<8xf32>
    %15 = vector.shape_cast %14 : vector<8xf32> to vector<8x1xf32>
    %16 = math.sqrt %15 : vector<8x1xf32>
    %cst_6 = arith.constant 9.99999996E-13 : f32
    %17 = vector.broadcast %cst_6 : f32 to vector<8x1xf32>
    %18 = arith.maximumf %16, %17 : vector<8x1xf32>
    %19 = vector.broadcast %18 : vector<8x1xf32> to vector<8x32xf32>
    %20 = arith.divf %4, %19 : vector<8x32xf32>
    %cst_7 = arith.constant 3.77964473 : f32
    %21 = vector.broadcast %cst_7 : f32 to vector<8x32xf32>
    %22 = arith.mulf %12, %21 : vector<8x32xf32>
    %cst_8 = arith.constant 3.77964473 : f32
    %23 = vector.broadcast %cst_8 : f32 to vector<8x32xf32>
    %24 = arith.mulf %20, %23 : vector<8x32xf32>
    %c0_9 = arith.constant 0 : index
    %c0_10 = arith.constant 0 : index
    %c0_11 = arith.constant 0 : index
    %25 = vector.load %arg3[%c0_9, %c0_10, %c0_11] : memref<2x8x32xf32, #tpu.memory_space<vmem>>, vector<1x8x32xf32>
    %26 = vector.shape_cast %25 : vector<1x8x32xf32> to vector<8x32xf32>
    %27 = vector.shape_cast %22 : vector<8x32xf32> to vector<1x8x32xf32>
    tpu.vector_store %arg3[%c0_9, %c0_10, %c0_11], %27 {strides = array<i32>} : memref<2x8x32xf32, #tpu.memory_space<vmem>>, vector<1x8x32xf32>,
    %c1 = arith.constant 1 : index
    %c0_12 = arith.constant 0 : index
    %c0_13 = arith.constant 0 : index
    %28 = vector.load %arg3[%c1, %c0_12, %c0_13] : memref<2x8x32xf32, #tpu.memory_space<vmem>>, vector<1x8x32xf32>
    %29 = vector.shape_cast %28 : vector<1x8x32xf32> to vector<8x32xf32>
    %30 = vector.shape_cast %24 : vector<8x32xf32> to vector<1x8x32xf32>
    tpu.vector_store %arg3[%c1, %c0_12, %c0_13], %30 {strides = array<i32>} : memref<2x8x32xf32, #tpu.memory_space<vmem>>, vector<1x8x32xf32>,
    %31 = arith.mulf %22, %24 : vector<8x32xf32>
    %c0_14 = arith.constant 0 : index
    %c0_15 = arith.constant 0 : index
    %32 = vector.load %arg4[%c0_14, %c0_15] : memref<1x1xf32, #tpu.memory_space<vmem>>, vector<1x1xf32>
    %33 = vector.shape_cast %31 : vector<8x32xf32> to vector<1x8x32xf32>
    %cst_16 = arith.constant dense<0.000000e+00> : vector<1xf32>
    %34 = vector.multi_reduction <add>, %33, %cst_16 [1, 2] : vector<1x8x32xf32> to vector<1xf32>
    %35 = vector.shape_cast %34 : vector<1xf32> to vector<1x1x1xf32>
    %36 = vector.extract %35[0, 0, 0] : f32 from vector<1x1x1xf32>
    %37 = vector.broadcast %36 : f32 to vector<1x1xf32>
    %cst_17 = arith.constant 2.000000e+00 : f32
    %38 = vector.broadcast %cst_17 : f32 to vector<1x1xf32>
    %39 = arith.mulf %38, %37 : vector<1x1xf32>
    %40 = arith.addf %32, %39 : vector<1x1xf32>
    %c0_18 = arith.constant 0 : index
    %c0_19 = arith.constant 0 : index
    %41 = vector.load %arg4[%c0_18, %c0_19] : memref<1x1xf32, #tpu.memory_space<vmem>>, vector<1x1xf32>
    tpu.vector_store %arg4[%c0_18, %c0_19], %40 {strides = array<i32>} : memref<1x1xf32, #tpu.memory_space<vmem>>, vector<1x1xf32>,
    return
  }
  func.func @transform_0(%arg0: i32) -> (i32, i32) {
    %c0_i32 = arith.constant 0 : i32
    %c0_i32_0 = arith.constant 0 : i32
    return %arg0, %c0_i32 : i32, i32
  }
  func.func @transform_1(%arg0: i32) -> (i32, i32) {
    %c0_i32 = arith.constant 0 : i32
    %c0_i32_0 = arith.constant 0 : i32
    return %arg0, %c0_i32 : i32, i32
  }
  func.func @transform_2(%arg0: i32) -> (i32, i32, i32) {
    %c0_i32 = arith.constant 0 : i32
    %c0_i32_0 = arith.constant 0 : i32
    %c0_i32_1 = arith.constant 0 : i32
    return %c0_i32, %arg0, %c0_i32_0 : i32, i32, i32
  }
  func.func @transform_3(%arg0: i32) -> (i32, i32) {
    %c0_i32 = arith.constant 0 : i32
    %c0_i32_0 = arith.constant 0 : i32
    %c0_i32_1 = arith.constant 0 : i32
    return %c0_i32, %c0_i32_0 : i32, i32
  }
}

</mosaic_0001>

<llo_original>
// kernel: tpu_custom_call.1
$region0: #{tpu_custom_call.1}
  #allocation0 [shape = 'u32[]', space=smem, size = 0x4, offset = 0x4, fixed_abs, tag = 'smem constant byte address 0x4 - core index']
  #allocation1 [shape = 'u32[144,128]{1,0:T(1,128)}', space=vmem, size = 0x12000, scoped, tag = 'internal scratch']
  %s0 = inlined_call_operand.hbm [shape: f32[8,32], index: 0, kind: input, shape index: {}]
  %s1 = inlined_call_operand.hbm [shape: f32[8,32], index: 1, kind: input, shape index: {}]
  %s2 = inlined_call_operand.hbm [shape: f32[2,8,32], index: 2, kind: output, shape index: {0}]
  %s3 = inlined_call_operand.hbm [shape: f32[1,1], index: 3, kind: output, shape index: {1}]
  %4 = xla_tuple %s2, %s3
  %s5 = sld [smem:[#allocation0]]
  $region38: #{tpu_custom_call.1} parent=0
    _
  %s7 = ssub.s32 1, %s5
  %s8 = scalar_select 0, %s7, %s5
  $region1: #{tpu_custom_call.1} parent=0
    #allocation2 [shape = 'u8[4096]{0}', space=vmem, size = 0x1000, scoped, tag = 'input window, operand 0, single buffered']
    #allocation3 [shape = 's32[1]{0}', space=sflag, size = 0x4, scoped, tag = 'scoped memory for tpu_custom_call.1']
    #allocation4 [shape = 's32[1]{0}', space=sflag, size = 0x4, scoped, tag = 'scoped memory for tpu_custom_call.1']
    #allocation5 [shape = 'u8[4096]{0}', space=vmem, size = 0x1000, scoped, tag = 'input window, operand 1, single buffered']
    #allocation6 [shape = 's32[1]{0}', space=sflag, size = 0x4, scoped, tag = 'scoped memory for tpu_custom_call.1']
    #allocation7 [shape = 'u8[8192]{0}', space=vmem, size = 0x2000, scoped, tag = 'output window, operand 0, single buffered']
    #allocation8 [shape = 'u8[512]{0}', space=vmem, size = 0x400, scoped, tag = 'output window, operand 1, single buffered']
    #allocation9 [shape = 's32[1]{0}', space=sflag, size = 0x4, scoped, tag = 'scoped memory for tpu_custom_call.1']
    %9 = vsyncpa [#allocation3], 0
    %10 = vsyncpa [#allocation6], 0
    %11 = vsyncpa [#allocation4], 0
    %12 = vsyncpa [#allocation9], 0
    // Predicated region
    $region2: #{tpu_custom_call.1} parent=1 // pred_check
      _
    $region3: #{tpu_custom_call.1} parent=1 // pred_check_branch
      %14 = sbr.rel (0) target = $region5
    $region4: #{tpu_custom_call.1} parent=1 // pred_region
      %s16 = ssub.s32 128, 128
      %17 = vsyncadd [#allocation3], %s16
      %s19 = sshll.u32 [#allocation2], 4
      %s20 = int_to_ptr.vmem [resolvable:$true] %s19
      %22 = dma.hbm_to_vmem [thread:$0]  %s0, 128, %s20, [#allocation3]
    $region5: #{tpu_custom_call.1} parent=1 // pred_fallthru
      _
    // Predicated region
    $region6: #{tpu_custom_call.1} parent=1 // pred_check
      _
    $region7: #{tpu_custom_call.1} parent=1 // pred_check_branch
      %24 = sbr.rel (0) target = $region9
    $region8: #{tpu_custom_call.1} parent=1 // pred_region
      %s26 = ssub.s32 128, 128
      %27 = vsyncadd [#allocation6], %s26
      %s29 = sshll.u32 [#allocation5], 4
      %s30 = int_to_ptr.vmem [resolvable:$true] %s29
      %32 = dma.hbm_to_vmem [thread:$0]  %s1, 128, %s30, [#allocation6]
    $region9: #{tpu_custom_call.1} parent=1 // pred_fallthru
      _
    // Predicated region
    $region10: #{tpu_custom_call.1} parent=1 // pred_check
      _
    $region11: #{tpu_custom_call.1} parent=1 // pred_check_branch
      %34 = sbr.rel (0) target = $region13
    $region12: #{tpu_custom_call.1} parent=1 // pred_region
      %35 = dma.done [#allocation3], 128
    $region13: #{tpu_custom_call.1} parent=1 // pred_fallthru
      _
    // Predicated region
    $region14: #{tpu_custom_call.1} parent=1 // pred_check
      _
    $region15: #{tpu_custom_call.1} parent=1 // pred_check_branch
      %37 = sbr.rel (0) target = $region17
    $region16: #{tpu_custom_call.1} parent=1 // pred_region
      %38 = dma.done [#allocation6], 128
    $region17: #{tpu_custom_call.1} parent=1 // pred_fallthru
      _
    %p39 = scmp.eq.s32.totalorder 0, 0
    // Predicated region
    $region18: #{tpu_custom_call.1} parent=1 // pred_check
      %p40 = pneg %p39
    $region19: #{tpu_custom_call.1} parent=1 // pred_check_branch
      %42 = sbr.rel (%p40) target = $region21
    $region20: #{tpu_custom_call.1} parent=1 // pred_region
      %vm43 = vcmask 0
      %44 = vst.msk [vmem:[#allocation8] sm:$0x1] %vm43, 0.0
    $region21: #{tpu_custom_call.1} parent=1 // pred_fallthru
      _
    %v45 = vld [vmem:[#allocation2] sm:$0xff]
    %v46 = vld [vmem:[#allocation5] sm:$0xff]
    %v47 = vmul.f32 %v45, %v45
    %vm48 = vcmask 261120
    %v49 = vsel %vm48, %v47, 0.0
    %50 = vadd.xlane.f32.xlu0 %v49
    %v51 = vpop.xlane.xlu0 %50
    %v52 = vrsqrt.pop %v51
    %v53 = vmul.f32 %v51, %v52
    %vm54 = vcmp.eq.f32.partialorder %v51, inf
    %v55 = vsel %vm54, %v51, %v53
    %vm56 = vcmp.eq.f32.partialorder %v51, 0.0
    %v57 = vand.u32 %v51, 2147483648
    %v58 = vsel %vm56, %v57, %v55
    %v59 = vmax.f32 %v58, 1e-12
    %v60 = vrcp.pop %v59
    %v61 = vmul.f32 %v45, %v60
    %v62 = vmul.f32 %v46, %v46
    %v63 = vsel %vm48, %v62, 0.0
    %64 = vadd.xlane.f32.xlu0 %v63
    %v65 = vpop.xlane.xlu0 %64
    %v66 = vrsqrt.pop %v65
    %v67 = vmul.f32 %v65, %v66
    %vm68 = vcmp.eq.f32.partialorder %v65, inf
    %v69 = vsel %vm68, %v65, %v67
    %vm70 = vcmp.eq.f32.partialorder %v65, 0.0
    %v71 = vand.u32 %v65, 2147483648
    %v72 = vsel %vm70, %v71, %v69
    %v73 = vmax.f32 %v72, 1e-12
    %v74 = vrcp.pop %v73
    %v75 = vmul.f32 %v46, %v74
    %v76 = vmul.f32 %v61, 3.7796447
    %v77 = vmul.f32 %v75, 3.7796447
    %78 = vst.msk [vmem:[#allocation7] sm:$0xff] %vm48, %v76
    %s79 = scalar_lea.vmem [#allocation7], 8
    %80 = vst.msk [vmem:[%s79] sm:$0xff] %vm48, %v77
    %v81 = vmul.f32 %v76, %v77
    %v82 = vld [vmem:[#allocation8] sm:$0x1]
    %v83 = vsel %vm48, %v81, 0.0
    %84 = vadd.xlane.f32.xlu0 %v83
    %v85 = vpop.xlane.xlu0 %84
    %v86 = vrot.slane %v85, 4
    %v87 = vadd.f32 %v85, %v86
    %v88 = vrot.slane %v87, 2
    %v89 = vadd.f32 %v87, %v88
    %v90 = vrot.slane %v89, 1
    %v91 = vadd.f32 %v89, %v90
    %s92 = vtos %v91
    %v93 = vstv %s92
    %v94 = vmul.f32 %v93, 2.0
    %v95 = vadd.f32 %v82, %v94
    %vm96 = vcmask 0
    %97 = vst.msk [vmem:[#allocation8] sm:$0x1] %vm96, %v95
    // Predicated region
    $region22: #{tpu_custom_call.1} parent=1 // pred_check
      _
    $region23: #{tpu_custom_call.1} parent=1 // pred_check_branch
      %99 = sbr.rel (0) target = $region25
    $region24: #{tpu_custom_call.1} parent=1 // pred_region
      %s101 = ssub.s32 256, 256
      %102 = vsyncadd [#allocation4], %s101
      %s103 = sshll.u32 [#allocation7], 4
      %s104 = int_to_ptr.vmem [resolvable:$true] %s103
      %109 = dma.vmem_to_hbm [thread:$0]  %s104, 256, %s2, [#allocation4], 128, 128, 8
    $region25: #{tpu_custom_call.1} parent=1 // pred_fallthru
      _
    // Predicated region
    $region26: #{tpu_custom_call.1} parent=1 // pred_check
      _
    $region27: #{tpu_custom_call.1} parent=1 // pred_check_branch
      %111 = sbr.rel (0) target = $region29
    $region28: #{tpu_custom_call.1} parent=1 // pred_region
      %s113 = ssub.s32 16, 16
      %114 = vsyncadd [#allocation9], %s113
      %s116 = sshll.u32 [#allocation8], 4
      %s117 = int_to_ptr.vmem [resolvable:$true] %s116
      %119 = dma.vmem_to_hbm [thread:$0]  %s117, 16, %s3, [#allocation9]
    $region29: #{tpu_custom_call.1} parent=1 // pred_fallthru
      _
    // Predicated region
    $region30: #{tpu_custom_call.1} parent=1 // pred_check
      _
    $region31: #{tpu_custom_call.1} parent=1 // pred_check_branch
      %121 = sbr.rel (0) target = $region33
    $region32: #{tpu_custom_call.1} parent=1 // pred_region
      %122 = dma.done [#allocation4], 256
    $region33: #{tpu_custom_call.1} parent=1 // pred_fallthru
      _
    // Predicated region
    $region34: #{tpu_custom_call.1} parent=1 // pred_check
      _
    $region35: #{tpu_custom_call.1} parent=1 // pred_check_branch
      %124 = sbr.rel (0) target = $region37
    $region36: #{tpu_custom_call.1} parent=1 // pred_region
      %125 = dma.done [#allocation9], 16
    $region37: #{tpu_custom_call.1} parent=1 // pred_fallthru
      _
    %126 = vsyncpa [#allocation3], 1
    %127 = vsyncpa [#allocation6], 1
    %128 = vsyncpa [#allocation4], 1
    %129 = vsyncpa [#allocation9], 1

</llo_original>
